<compile_context>
chip_gen: v7x
topology: tpu7x:2x2x1
jax: 0.10.0
libtpu: 0.0.40
codegen_flags: <defaults>
</compile_context>

<pallas_src>
import functools

import jax
import jax.numpy as jnp
import numpy as np
from jax.experimental import pallas as pl
from jax.experimental.pallas import tpu as pltpu


# ---------------------------------------------------------------------------
# Parameter / buffer setup (plain JAX) — deterministic, matches torch init
# ---------------------------------------------------------------------------
def make_positional_encoding(max_len: int, d_model: int) -> jnp.ndarray:
    """Equivalent to the `pe` buffer in the torch module, stored as (max_len, d_model)."""
    position = jnp.arange(max_len, dtype=jnp.float32)[:, None]              # (max_len, 1)
    div_term = jnp.exp(
        jnp.arange(0, d_model, 2, dtype=jnp.float32)
        * (-jnp.log(jnp.float32(10000.0)) / d_model)
    )                                                                        # (d_model/2,)
    pe = jnp.zeros((max_len, d_model), dtype=jnp.float32)
    pe = pe.at[:, 0::2].set(jnp.sin(position * div_term))
    pe = pe.at[:, 1::2].set(jnp.cos(position * div_term))
    return pe


# ---------------------------------------------------------------------------
# Kernels
# ---------------------------------------------------------------------------
def pe_add_kernel(x_ref, pe_ref, o_ref, *, batch):
    # x_ref/o_ref: (tS, B*D) lane-dense slab; pe_ref: (tS, D)
    pe_row = pe_ref[...]                                   # (tS, D)
    pe_bcast = jnp.tile(pe_row, (1, batch))                # (tS, B*D): pe repeated per batch
    o_ref[...] = (x_ref[...] + pe_bcast).astype(o_ref.dtype)


def pe_add_dropout_kernel(x_ref, pe_ref, rnd_ref, o_ref, *, batch, p):
    # Training path: (x + pe) then inverted dropout with keep prob (1 - p).
    # rnd_ref holds uniform [0,1) floats; drop where rnd < p.
    pe_row = pe_ref[...]
    pe_bcast = jnp.tile(pe_row, (1, batch))
    x = x_ref[...] + pe_bcast
    keep = rnd_ref[...] >= jnp.float32(p)
    scale = jnp.float32(1.0 / (1.0 - p))
    o_ref[...] = jnp.where(keep, x * scale, jnp.zeros_like(x)).astype(o_ref.dtype)


# ---------------------------------------------------------------------------
# Wrapper
# ---------------------------------------------------------------------------
def positional_embedding(x, pe, *, p=0.1, training=False, rng_key=None, tile_s=None):
    """x: (S, B, D); pe: (max_len, D) with max_len >= S."""
    S, B, D = x.shape
    max_len, d_model = pe.shape
    assert max_len >= S and d_model == D

    row = B * D
    itemsize = jnp.dtype(x.dtype).itemsize
    x2 = x.reshape(S, row)                                 # lane-dense view, free reshape

    # ---- tile sizing: target ~4 MiB per x block, rows a multiple of 8 ----
    if tile_s is None:
        target_block_bytes = 4 << 20
        tile_s = max(8, (target_block_bytes // max(row * itemsize, 1)) // 8 * 8)
    tile_s = min(tile_s, S)
    if S >= 8:
        tile_s = max(8, (tile_s // 8) * 8)                 # (8,128) sublane rule
        pe_in = pe                                         # no host-side slice needed
    else:
        tile_s = S                                         # tiny-S fallback: full-dim blocks
        pe_in = pe[:S]

    grid = (pl.cdiv(S, tile_s),)

    # Resident VMEM ≈ double-buffered x, rnd, out blocks + small pe block.
    block_bytes = tile_s * row * itemsize
    vmem_limit = int(min(max(8 * block_bytes + (2 << 20), 32 << 20), 48 << 20))
    compiler_params = pltpu.CompilerParams(
        dimension_semantics=("parallel",),                 # disjoint output slices per step
        vmem_limit_bytes=vmem_limit,
    )

    x_spec = pl.BlockSpec((tile_s, row), lambda i: (i, 0))
    pe_spec = pl.BlockSpec((tile_s, D), lambda i: (i, 0))
    out_spec = pl.BlockSpec((tile_s, row), lambda i: (i, 0))
    out_shape = jax.ShapeDtypeStruct((S, row), x.dtype)

    if not training:
        out2 = pl.pallas_call(
            functools.partial(pe_add_kernel, batch=B),
            out_shape=out_shape,
            grid_spec=pltpu.PrefetchScalarGridSpec(
                num_scalar_prefetch=0,
                grid=grid,
                in_specs=[x_spec, pe_spec],
                out_specs=out_spec,
            ),
            compiler_params=compiler_params,
        )(x2, pe_in)
        return out2.reshape(S, B, D)

    # Training mode: dropout mask from a uniform draw generated outside the kernel
    # (works on TPU and in interpret mode; semantics match torch, RNG bits do not).
    if rng_key is None:
        rng_key = jax.random.PRNGKey(0)
    rnd = jax.random.uniform(rng_key, (S, row), dtype=jnp.float32)

    out2 = pl.pallas_call(
        functools.partial(pe_add_dropout_kernel, batch=B, p=p),
        out_shape=out_shape,
        grid_spec=pltpu.PrefetchScalarGridSpec(
            num_scalar_prefetch=0,
            grid=grid,
            in_specs=[x_spec, pe_spec, pl.BlockSpec((tile_s, row), lambda i: (i, 0))],
            out_specs=out_spec,
        ),
        compiler_params=compiler_params,
    )(x2, pe_in, rnd)
    return out2.reshape(S, B, D)


# ---------------------------------------------------------------------------
# Demo / correctness check
# ---------------------------------------------------------------------------
if __name__ == "__main__":
    d_model = 32
    max_len = 64
    seq_len = 8
    batch = 2
    p = 0.1

    key = jax.random.PRNGKey(0)
    kx, kdrop = jax.random.split(key)
    x = jax.random.normal(kx, (seq_len, batch, d_model), dtype=jnp.float32)
    pe = make_positional_encoding(max_len, d_model)

    # Reference: x + pe[:S] broadcast over the batch axis (module.eval()).
    ref = x + pe[:seq_len][:, None, :]

    # Eval-mode forward (dropout is identity).
    out = positional_embedding(x, pe, p=p, training=False)
    out = jax.block_until_ready(out)
    np.testing.assert_allclose(np.asarray(out), np.asarray(ref), rtol=1e-6, atol=1e-6)

    # Training-mode forward (fused add + inverted dropout).
    out_tr = positional_embedding(x, pe, p=p, training=True, rng_key=kdrop)
    out_tr = jax.block_until_ready(out_tr)
    out_tr_np = np.asarray(out_tr)
    kept = out_tr_np != 0.0
    np.testing.assert_allclose(
        out_tr_np[kept], (np.asarray(ref) / (1.0 - p))[kept], rtol=1e-5, atol=1e-5
    )
    drop_frac = 1.0 - kept.mean()
    assert 0.0 <= drop_frac <= 0.5, f"unreasonable dropout fraction {drop_frac}"

    print("KERNEL_OK")
</pallas_src>

<mosaic_0001>
module attributes {stable_mosaic.version = 11 : i64} {
  func.func @pe_add_kernel(%arg0: i32, %arg1: memref<8x64xf32, #tpu.memory_space<vmem>>, %arg2: memref<8x32xf32, #tpu.memory_space<vmem>>, %arg3: memref<8x64xf32, #tpu.memory_space<vmem>>) attributes {dimension_semantics = [#tpu.dimension_semantics<parallel>], iteration_bounds = array<i64: 1>, scalar_prefetch = 0 : i64, scratch_operands = 0 : i64, tpu.core_type = #tpu.core_type<tc>, window_params = [{transform_indices = @transform_0, window_bounds = array<i64: 8, 64>}, {transform_indices = @transform_1, window_bounds = array<i64: 8, 32>}, {transform_indices = @transform_2, window_bounds = array<i64: 8, 64>}]} {
    %c0 = arith.constant 0 : index
    %c0_0 = arith.constant 0 : index
    %0 = vector.load %arg2[%c0, %c0_0] : memref<8x32xf32, #tpu.memory_space<vmem>>, vector<8x32xf32>
    %1 = tpu.concatenate %0, %0 in 1 : vector<8x32xf32>, vector<8x32xf32> -> vector<8x64xf32>
    %c0_1 = arith.constant 0 : index
    %c0_2 = arith.constant 0 : index
    %2 = vector.load %arg1[%c0_1, %c0_2] : memref<8x64xf32, #tpu.memory_space<vmem>>, vector<8x64xf32>
    %3 = arith.addf %2, %1 : vector<8x64xf32>
    %c0_3 = arith.constant 0 : index
    %c0_4 = arith.constant 0 : index
    %4 = vector.load %arg3[%c0_3, %c0_4] : memref<8x64xf32, #tpu.memory_space<vmem>>, vector<8x64xf32>
    tpu.vector_store %arg3[%c0_3, %c0_4], %3 {strides = array<i32>} : memref<8x64xf32, #tpu.memory_space<vmem>>, vector<8x64xf32>,
    return
  }
  func.func @transform_0(%arg0: i32) -> (i32, i32) {
    %c0_i32 = arith.constant 0 : i32
    %c0_i32_0 = arith.constant 0 : i32
    return %arg0, %c0_i32 : i32, i32
  }
  func.func @transform_1(%arg0: i32) -> (i32, i32) {
    %c0_i32 = arith.constant 0 : i32
    %c0_i32_0 = arith.constant 0 : i32
    return %arg0, %c0_i32 : i32, i32
  }
  func.func @transform_2(%arg0: i32) -> (i32, i32) {
    %c0_i32 = arith.constant 0 : i32
    %c0_i32_0 = arith.constant 0 : i32
    return %arg0, %c0_i32 : i32, i32
  }
}

</mosaic_0001>

<llo_original>
// kernel: tpu_custom_call.1
$region0: #{tpu_custom_call.1}
  #allocation0 [shape = 'u32[]', space=smem, size = 0x4, offset = 0x4, fixed_abs, tag = 'smem constant byte address 0x4 - core index']
  #allocation1 [shape = 'u32[144,128]{1,0:T(1,128)}', space=vmem, size = 0x12000, scoped, tag = 'internal scratch']
  %s0 = inlined_call_operand.vmem [shape: f32[8,64], index: 0, kind: input, shape index: {}]
  %s1 = inlined_call_operand.vmem [shape: f32[64,32], index: 1, kind: input, shape index: {}]
  %s2 = inlined_call_operand.hbm [shape: f32[8,64], index: 2, kind: output, shape index: {}]
  %s3 = sld [smem:[#allocation0]]
  $region18: #{tpu_custom_call.1} parent=0
    _
  %s5 = ssub.s32 1, %s3
  %s6 = scalar_select 0, %s5, %s3
  $region1: #{tpu_custom_call.1} parent=0
    #allocation2 [shape = 'u8[4096]{0}', space=vmem, size = 0x1000, scoped, tag = 'output window, operand 0, single buffered']
    #allocation3 [shape = 's32[1]{0}', space=sflag, size = 0x4, scoped, tag = 'scoped memory for tpu_custom_call.1']
    %7 = vsyncpa [#allocation3], 0
    // Predicated region
    $region2: #{tpu_custom_call.1} parent=1 // pred_check
      _
    $region3: #{tpu_custom_call.1} parent=1 // pred_check_branch
      %9 = sbr.rel (0) target = $region5
    $region4: #{tpu_custom_call.1} parent=1 // pred_region
      _
    $region5: #{tpu_custom_call.1} parent=1 // pred_fallthru
      _
    // Predicated region
    $region6: #{tpu_custom_call.1} parent=1 // pred_check
      _
    $region7: #{tpu_custom_call.1} parent=1 // pred_check_branch
      %11 = sbr.rel (0) target = $region9
    $region8: #{tpu_custom_call.1} parent=1 // pred_region
      _
    $region9: #{tpu_custom_call.1} parent=1 // pred_fallthru
      _
    %v12 = vld [vmem:[%s1] sm:$0xff]
    %14 = vrot.lane.b32.xlu0 %v12, 32
    %v15 = vpop.permute.xlu0 %14
    %vm17 = vcmask 261120
    %v18 = vsel %vm17, %v12, %v15
    %v19 = vld [vmem:[%s0] sm:$0xff]
    %v20 = vadd.f32 %v19, %v18
    %vm21 = vcmask 523264
    %22 = vst.msk [vmem:[#allocation2] sm:$0xff] %vm21, %v20
    // Predicated region
    $region10: #{tpu_custom_call.1} parent=1 // pred_check
      _
    $region11: #{tpu_custom_call.1} parent=1 // pred_check_branch
      %24 = sbr.rel (0) target = $region13
    $region12: #{tpu_custom_call.1} parent=1 // pred_region
      %s26 = ssub.s32 128, 128
      %27 = vsyncadd [#allocation3], %s26
      %s29 = sshll.u32 [#allocation2], 4
      %s30 = int_to_ptr.vmem [resolvable:$true] %s29
      %32 = dma.vmem_to_hbm [thread:$0]  %s30, 128, %s2, [#allocation3]
    $region13: #{tpu_custom_call.1} parent=1 // pred_fallthru
      _
    // Predicated region
    $region14: #{tpu_custom_call.1} parent=1 // pred_check
      _
    $region15: #{tpu_custom_call.1} parent=1 // pred_check_branch
      %34 = sbr.rel (0) target = $region17
    $region16: #{tpu_custom_call.1} parent=1 // pred_region
      %35 = dma.done [#allocation3], 128
    $region17: #{tpu_custom_call.1} parent=1 // pred_fallthru
      _
    %36 = vsyncpa [#allocation3], 1

</llo_original>
